<compile_context>
chip_gen: v5e
topology: v5e:2x2
jax: 0.10.0
libtpu: 0.0.40
codegen_flags: <defaults>
</compile_context>

<pallas_src>
import functools

import jax
import jax.numpy as jnp
from jax.experimental import pallas as pl
from jax.experimental.pallas import tpu as pltpu

_LANE = 128
_SUBLANE = 8


def _round_up(x: int, m: int) -> int:
    return (x + m - 1) // m * m


def _grid_sample_kernel(coords_ref, grid_ref, out_ref, *, side: int):
    """coords_ref: (TILE_N, 2) f32, grid_ref: (S*S, C_pad) f32, out_ref: (TILE_N, C_pad) f32."""
    side_f = float(side)
    ss = side * side

    coords = coords_ref[...]                      # (TILE_N, 2)
    x = coords[:, 0:1]                            # (TILE_N, 1) width coord
    y = coords[:, 1:2]                            # (TILE_N, 1) height coord

    # align_corners=False un-normalization: ix = ((x+1)*S - 1) / 2
    ix = x * (side_f * 0.5) + ((side_f - 1.0) * 0.5)
    iy = y * (side_f * 0.5) + ((side_f - 1.0) * 0.5)

    x0f = jnp.floor(ix)
    y0f = jnp.floor(iy)
    wx = ix - x0f                                 # (TILE_N, 1)
    wy = iy - y0f

    x0 = x0f.astype(jnp.int32)
    y0 = y0f.astype(jnp.int32)
    x1 = x0 + 1
    y1 = y0 + 1

    # Factored validity masking (zeros padding): corner validity is
    # valid_x AND valid_y, so zeroing each axis weight independently is exact.
    zero = jnp.zeros_like(wx)
    mwx0 = jnp.where((x0 >= 0) & (x0 < side), 1.0 - wx, zero)   # (TILE_N, 1)
    mwx1 = jnp.where((x1 >= 0) & (x1 < side), wx, zero)
    mwy0 = jnp.where((y0 >= 0) & (y0 < side), 1.0 - wy, zero)
    mwy1 = jnp.where((y1 >= 0) & (y1 < side), wy, zero)

    # Flat index of the (x0, y0) corner, wrapped into [0, S*S) so the single
    # base one-hot exists whenever any of the four taps can be in-bounds.
    fbase = y0 * side + x0
    fbase = jnp.where(fbase < 0, fbase + ss, fbase)             # (TILE_N, 1)

    # Integer iota / compare (exact for any grid size), built once per tile.
    col = jax.lax.broadcasted_iota(jnp.int32, (1, ss), 1)       # (1, S*S)
    base = (col == fbase).astype(jnp.float32)                   # (TILE_N, S*S)

    # x-stage: taps at fbase and fbase+1 (mod S*S). Roll runs on the XLU.
    wxoh = mwx0 * base + mwx1 * pltpu.roll(base, 1, 1)          # (TILE_N, S*S)
    # y-stage: shift the whole x-weighted row down one grid row (+S mod S*S).
    wmat = mwy0 * wxoh + mwy1 * pltpu.roll(wxoh, side, 1)       # (TILE_N, S*S)

    out_ref[...] = jnp.dot(wmat, grid_ref[...],
                           preferred_element_type=jnp.float32)


def prepare_grid_param(grid_param: jax.Array) -> jax.Array:
    """One-time layout prep: (C, S, S) -> (S*S, C_pad) with C padded to 128 lanes.

    Do this once at init; grid_forward consumes the prepared layout directly so
    no per-call reshape/transpose of the parameter is needed.
    """
    C, S, S2 = grid_param.shape
    assert S == S2
    c_pad = _round_up(C, _LANE)
    flat = jnp.transpose(grid_param.reshape(C, S * S), (1, 0))   # (S*S, C)
    if c_pad != C:
        flat = jnp.pad(flat, ((0, 0), (0, c_pad - C)))
    return flat


def grid_forward(coords: jax.Array, grid_flat: jax.Array, *,
                 side: int, out_features: int, tile_n: int | None = None):
    """Pallas equivalent of GRID.forward.

    coords:    (N, 2) float32 in [-1, 1]
    grid_flat: (S*S, C_pad) float32, produced once by prepare_grid_param
    returns (sampled (N, out_features), coords (N, 2))
    """
    N = coords.shape[0]
    SS, c_pad = grid_flat.shape
    assert SS == side * side
    assert c_pad % _LANE == 0 and out_features <= c_pad

    if tile_n is None:
        # ~4 live (tile, S*S) f32 temporaries + double-buffered (tile, C_pad)
        # output, budgeted to ~8 MiB so it fits comfortably under v7x's 64 MiB
        # VMEM (and default scoped limits) while using large 512+ row tiles
        # whenever S*S is small.
        budget_bytes = 8 * 1024 * 1024
        per_row_bytes = (4 * SS + 2 * c_pad) * 4
        tile_n = max(_SUBLANE, min(1024, budget_bytes // per_row_bytes))
    tile_n = max(_SUBLANE, (int(tile_n) // _SUBLANE) * _SUBLANE)

    # Pad N to a sublane multiple / tile multiple.
    n8 = max(_SUBLANE, _round_up(N, _SUBLANE))
    if n8 <= tile_n:
        tile_n = n8
        n_pad = n8
    else:
        n_pad = _round_up(N, tile_n)

    coords_p = coords if n_pad == N else jnp.pad(coords, ((0, n_pad - N), (0, 0)))

    kernel = functools.partial(_grid_sample_kernel, side=side)

    sampled_p = pl.pallas_call(
        kernel,
        out_shape=jax.ShapeDtypeStruct((n_pad, c_pad), jnp.float32),
        grid=(n_pad // tile_n,),
        in_specs=[
            pl.BlockSpec((tile_n, 2), lambda i: (i, 0)),
            # Constant block index -> parameter stays resident in VMEM.
            pl.BlockSpec((SS, c_pad), lambda i: (0, 0)),
        ],
        out_specs=pl.BlockSpec((tile_n, c_pad), lambda i: (i, 0)),
        compiler_params=pltpu.CompilerParams(
            dimension_semantics=("parallel",),
            vmem_limit_bytes=32 * 1024 * 1024,
        ),
    )(coords_p, grid_flat)

    sampled = sampled_p[:N, :out_features]

    # The torch module also returns coords (with requires_grad set); in JAX
    # this is just the input array passed through.
    return sampled, coords


def _reference_grid_sample(coords, grid_param):
    """Pure-JAX reference of bilinear grid_sample, align_corners=False, zeros pad."""
    C, S, _ = grid_param.shape
    x = coords[:, 0]
    y = coords[:, 1]
    ix = ((x + 1.0) * S - 1.0) * 0.5
    iy = ((y + 1.0) * S - 1.0) * 0.5
    x0 = jnp.floor(ix).astype(jnp.int32)
    y0 = jnp.floor(iy).astype(jnp.int32)
    x1 = x0 + 1
    y1 = y0 + 1
    wx = ix - x0.astype(jnp.float32)
    wy = iy - y0.astype(jnp.float32)

    def tap(cx, cy, w):
        valid = (cx >= 0) & (cx < S) & (cy >= 0) & (cy < S)
        cxc = jnp.clip(cx, 0, S - 1)
        cyc = jnp.clip(cy, 0, S - 1)
        vals = grid_param[:, cyc, cxc]                 # (C, N)
        return jnp.where(valid[None, :], vals, 0.0) * w[None, :]

    out = (tap(x0, y0, (1 - wx) * (1 - wy)) + tap(x1, y0, wx * (1 - wy)) +
           tap(x0, y1, (1 - wx) * wy) + tap(x1, y1, wx * wy))
    return out.T                                        # (N, C)


if __name__ == "__main__":
    key = jax.random.PRNGKey(0)
    k_grid, k_coords, k_big = jax.random.split(key, 3)

    out_features = 32
    side_length = 16
    N = 8

    grid_param = jax.random.normal(
        k_grid, (out_features, side_length, side_length), dtype=jnp.float32)
    coords = jax.random.uniform(
        k_coords, (N, 2), dtype=jnp.float32, minval=-1.0, maxval=1.0)

    # One-time layout preparation (replaces the per-call reshape/transpose).
    grid_flat = prepare_grid_param(grid_param)

    sampled, coords_out = grid_forward(
        coords, grid_flat, side=side_length, out_features=out_features)
    jax.block_until_ready(sampled)
    jax.block_until_ready(coords_out)

    ref = _reference_grid_sample(coords, grid_param)
    assert sampled.shape == (N, out_features)
    assert coords_out.shape == (N, 2)
    assert jnp.allclose(sampled, ref, atol=1e-5, rtol=1e-5)

    # Larger batch: exercises N tiling/padding, the VMEM-resident grid block
    # across multiple grid steps, and out-of-bounds corner handling of the
    # factored, roll-derived taps (right/bottom border taps occur frequently).
    N_big = 1000
    coords_big = jax.random.uniform(
        k_big, (N_big, 2), dtype=jnp.float32, minval=-1.0, maxval=1.0)
    sampled_big, _ = grid_forward(
        coords_big, grid_flat, side=side_length,
        out_features=out_features, tile_n=128)
    jax.block_until_ready(sampled_big)
    ref_big = _reference_grid_sample(coords_big, grid_param)
    assert sampled_big.shape == (N_big, out_features)
    assert jnp.allclose(sampled_big, ref_big, atol=1e-5, rtol=1e-5)

    # Edge coords: exactly -1 / +1 hit the left/top OOB corner (x0 = -1) and
    # the right/bottom OOB corner (x1 = S) simultaneously.
    coords_edge = jnp.array([[-1.0, -1.0], [1.0, 1.0], [-1.0, 1.0],
                             [1.0, -1.0], [0.0, 0.0], [0.999, -0.999],
                             [-0.999, 0.999], [0.5, -0.25]], dtype=jnp.float32)
    sampled_edge, _ = grid_forward(
        coords_edge, grid_flat, side=side_length, out_features=out_features)
    jax.block_until_ready(sampled_edge)
    ref_edge = _reference_grid_sample(coords_edge, grid_param)
    assert jnp.allclose(sampled_edge, ref_edge, atol=1e-5, rtol=1e-5)

    print("KERNEL_OK")
</pallas_src>

<mosaic_0001>
module attributes {stable_mosaic.version = 11 : i64} {
  func.func @_grid_sample_kernel(%arg0: i32, %arg1: memref<8x2xf32, #tpu.memory_space<vmem>>, %arg2: memref<256x128xf32, #tpu.memory_space<vmem>>, %arg3: memref<8x128xf32, #tpu.memory_space<vmem>>) attributes {dimension_semantics = [#tpu.dimension_semantics<parallel>], iteration_bounds = array<i64: 1>, scalar_prefetch = 0 : i64, scratch_operands = 0 : i64, tpu.core_type = #tpu.core_type<tc>, window_params = [{transform_indices = @transform_0, window_bounds = array<i64: 8, 2>}, {pipeline_mode = #tpu.pipeline_mode<synchronous>, transform_indices = @transform_1, window_bounds = array<i64: 256, 128>}, {transform_indices = @transform_2, window_bounds = array<i64: 8, 128>}]} {
    %c0 = arith.constant 0 : index
    %c0_0 = arith.constant 0 : index
    %0 = vector.load %arg1[%c0, %c0_0] : memref<8x2xf32, #tpu.memory_space<vmem>>, vector<8x2xf32>
    %1 = vector.extract_strided_slice %0 {offsets = [0, 0], sizes = [8, 1], strides = [1, 1]} : vector<8x2xf32> to vector<8x1xf32>
    %2 = vector.extract_strided_slice %0 {offsets = [0, 1], sizes = [8, 1], strides = [1, 1]} : vector<8x2xf32> to vector<8x1xf32>
    %cst = arith.constant 8.000000e+00 : f32
    %3 = vector.broadcast %cst : f32 to vector<8x1xf32>
    %4 = arith.mulf %1, %3 : vector<8x1xf32>
    %cst_1 = arith.constant 7.500000e+00 : f32
    %5 = vector.broadcast %cst_1 : f32 to vector<8x1xf32>
    %6 = arith.addf %4, %5 : vector<8x1xf32>
    %cst_2 = arith.constant 8.000000e+00 : f32
    %7 = vector.broadcast %cst_2 : f32 to vector<8x1xf32>
    %8 = arith.mulf %2, %7 : vector<8x1xf32>
    %cst_3 = arith.constant 7.500000e+00 : f32
    %9 = vector.broadcast %cst_3 : f32 to vector<8x1xf32>
    %10 = arith.addf %8, %9 : vector<8x1xf32>
    %11 = math.floor %6 : vector<8x1xf32>
    %12 = math.floor %10 : vector<8x1xf32>
    %13 = arith.subf %6, %11 : vector<8x1xf32>
    %14 = arith.subf %10, %12 : vector<8x1xf32>
    %15 = arith.fptosi %11 : vector<8x1xf32> to vector<8x1xi32>
    %16 = arith.fptosi %12 : vector<8x1xf32> to vector<8x1xi32>
    %c1_i32 = arith.constant 1 : i32
    %17 = vector.broadcast %c1_i32 : i32 to vector<8x1xi32>
    %18 = arith.addi %15, %17 : vector<8x1xi32>
    %c1_i32_4 = arith.constant 1 : i32
    %19 = vector.broadcast %c1_i32_4 : i32 to vector<8x1xi32>
    %20 = arith.addi %16, %19 : vector<8x1xi32>
    %cst_5 = arith.constant 0.000000e+00 : f32
    %21 = vector.broadcast %cst_5 : f32 to vector<8x1xf32>
    %c0_i32 = arith.constant 0 : i32
    %22 = vector.broadcast %c0_i32 : i32 to vector<8x1xi32>
    %23 = arith.cmpi sge, %15, %22 : vector<8x1xi32>
    %c16_i32 = arith.constant 16 : i32
    %24 = vector.broadcast %c16_i32 : i32 to vector<8x1xi32>
    %25 = arith.cmpi slt, %15, %24 : vector<8x1xi32>
    %26 = arith.andi %23, %25 : vector<8x1xi1>
    %cst_6 = arith.constant 1.000000e+00 : f32
    %27 = vector.broadcast %cst_6 : f32 to vector<8x1xf32>
    %28 = arith.subf %27, %13 : vector<8x1xf32>
    %29 = arith.select %26, %28, %21 : vector<8x1xi1>, vector<8x1xf32>
    %c0_i32_7 = arith.constant 0 : i32
    %30 = vector.broadcast %c0_i32_7 : i32 to vector<8x1xi32>
    %31 = arith.cmpi sge, %18, %30 : vector<8x1xi32>
    %c16_i32_8 = arith.constant 16 : i32
    %32 = vector.broadcast %c16_i32_8 : i32 to vector<8x1xi32>
    %33 = arith.cmpi slt, %18, %32 : vector<8x1xi32>
    %34 = arith.andi %31, %33 : vector<8x1xi1>
    %35 = arith.select %34, %13, %21 : vector<8x1xi1>, vector<8x1xf32>
    %c0_i32_9 = arith.constant 0 : i32
    %36 = vector.broadcast %c0_i32_9 : i32 to vector<8x1xi32>
    %37 = arith.cmpi sge, %16, %36 : vector<8x1xi32>
    %c16_i32_10 = arith.constant 16 : i32
    %38 = vector.broadcast %c16_i32_10 : i32 to vector<8x1xi32>
    %39 = arith.cmpi slt, %16, %38 : vector<8x1xi32>
    %40 = arith.andi %37, %39 : vector<8x1xi1>
    %cst_11 = arith.constant 1.000000e+00 : f32
    %41 = vector.broadcast %cst_11 : f32 to vector<8x1xf32>
    %42 = arith.subf %41, %14 : vector<8x1xf32>
    %43 = arith.select %40, %42, %21 : vector<8x1xi1>, vector<8x1xf32>
    %c0_i32_12 = arith.constant 0 : i32
    %44 = vector.broadcast %c0_i32_12 : i32 to vector<8x1xi32>
    %45 = arith.cmpi sge, %20, %44 : vector<8x1xi32>
    %c16_i32_13 = arith.constant 16 : i32
    %46 = vector.broadcast %c16_i32_13 : i32 to vector<8x1xi32>
    %47 = arith.cmpi slt, %20, %46 : vector<8x1xi32>
    %48 = arith.andi %45, %47 : vector<8x1xi1>
    %49 = arith.select %48, %14, %21 : vector<8x1xi1>, vector<8x1xf32>
    %c16_i32_14 = arith.constant 16 : i32
    %50 = vector.broadcast %c16_i32_14 : i32 to vector<8x1xi32>
    %51 = arith.muli %16, %50 : vector<8x1xi32>
    %52 = arith.addi %51, %15 : vector<8x1xi32>
    %c0_i32_15 = arith.constant 0 : i32
    %53 = vector.broadcast %c0_i32_15 : i32 to vector<8x1xi32>
    %54 = arith.cmpi slt, %52, %53 : vector<8x1xi32>
    %c256_i32 = arith.constant 256 : i32
    %55 = vector.broadcast %c256_i32 : i32 to vector<8x1xi32>
    %56 = arith.addi %52, %55 : vector<8x1xi32>
    %57 = arith.select %54, %56, %52 : vector<8x1xi1>, vector<8x1xi32>
    %58 = tpu.iota {dimensions = array<i32: 1>} : vector<1x256xi32>
    %59 = vector.broadcast %58 : vector<1x256xi32> to vector<8x256xi32>
    %60 = vector.broadcast %57 : vector<8x1xi32> to vector<8x256xi32>
    %61 = arith.cmpi eq, %59, %60 : vector<8x256xi32>
    %62 = arith.extui %61 : vector<8x256xi1> to vector<8x256xi32>
    %63 = arith.sitofp %62 : vector<8x256xi32> to vector<8x256xf32>
    %64 = vector.broadcast %29 : vector<8x1xf32> to vector<8x256xf32>
    %65 = arith.mulf %64, %63 : vector<8x256xf32>
    %c1_i32_16 = arith.constant 1 : i32
    %66 = tpu.dynamic_rotate %63 by %c1_i32_16 dim 1 : vector<8x256xf32>, i32 -> vector<8x256xf32>
    %67 = vector.broadcast %35 : vector<8x1xf32> to vector<8x256xf32>
    %68 = arith.mulf %67, %66 : vector<8x256xf32>
    %69 = arith.addf %65, %68 : vector<8x256xf32>
    %70 = vector.broadcast %43 : vector<8x1xf32> to vector<8x256xf32>
    %71 = arith.mulf %70, %69 : vector<8x256xf32>
    %c16_i32_17 = arith.constant 16 : i32
    %72 = tpu.dynamic_rotate %69 by %c16_i32_17 dim 1 : vector<8x256xf32>, i32 -> vector<8x256xf32>
    %73 = vector.broadcast %49 : vector<8x1xf32> to vector<8x256xf32>
    %74 = arith.mulf %73, %72 : vector<8x256xf32>
    %75 = arith.addf %71, %74 : vector<8x256xf32>
    %c0_18 = arith.constant 0 : index
    %c0_19 = arith.constant 0 : index
    %76 = vector.load %arg2[%c0_18, %c0_19] : memref<256x128xf32, #tpu.memory_space<vmem>>, vector<256x128xf32>
    %cst_20 = arith.constant dense<0.000000e+00> : vector<8x128xf32>
    %77 = tpu.matmul %75, %76, %cst_20 {dimension_numbers = #tpu.dot_dimension_numbers<[1], [0], [0], [1], [0, 0, 1, 1], [], []>} : vector<8x256xf32>, vector<256x128xf32>, vector<8x128xf32> -> vector<8x128xf32>
    %c0_21 = arith.constant 0 : index
    %c0_22 = arith.constant 0 : index
    %78 = vector.load %arg3[%c0_21, %c0_22] : memref<8x128xf32, #tpu.memory_space<vmem>>, vector<8x128xf32>
    tpu.vector_store %arg3[%c0_21, %c0_22], %77 {strides = array<i32>} : memref<8x128xf32, #tpu.memory_space<vmem>>, vector<8x128xf32>,
    return
  }
  func.func @transform_0(%arg0: i32) -> (i32, i32) {
    %c0_i32 = arith.constant 0 : i32
    %c0_i32_0 = arith.constant 0 : i32
    return %arg0, %c0_i32 : i32, i32
  }
  func.func @transform_1(%arg0: i32) -> (i32, i32) {
    %c0_i32 = arith.constant 0 : i32
    %c0_i32_0 = arith.constant 0 : i32
    %c0_i32_1 = arith.constant 0 : i32
    return %c0_i32, %c0_i32_0 : i32, i32
  }
  func.func @transform_2(%arg0: i32) -> (i32, i32) {
    %c0_i32 = arith.constant 0 : i32
    %c0_i32_0 = arith.constant 0 : i32
    return %arg0, %c0_i32 : i32, i32
  }
}

</mosaic_0001>

<llo_original>
// kernel: tpu_custom_call.1
$region0: #{tpu_custom_call.1}
  #allocation0 [shape = 'u32[]', space=smem, size = 0x4, offset = 0x4, fixed_abs, tag = 'smem constant byte address 0x4 - core index']
  #allocation1 [shape = 'u32[72,128]{1,0:T(1,128)}', space=vmem, size = 0x9000, scoped, tag = 'internal scratch']
  %s0 = inlined_call_operand.vmem [shape: f32[8,2], index: 0, kind: input, shape index: {}]
  %s1 = inlined_call_operand.hbm [shape: f32[256,128], index: 1, kind: input, shape index: {}]
  %s2 = inlined_call_operand.hbm [shape: f32[8,128], index: 2, kind: output, shape index: {}]
  %s3 = sld [smem:[#allocation0]]
  $region22: #{tpu_custom_call.1} parent=0
    _
  %s5 = ssub.s32 1, %s3
  %s6 = scalar_select 0, %s5, %s3
  $region1: #{tpu_custom_call.1} parent=0
    #allocation2 [shape = 'u8[131072]{0}', space=vmem, size = 0x20000, scoped, tag = 'input window, operand 1, single buffered']
    #allocation3 [shape = 's32[1]{0}', space=sflag, size = 0x4, scoped, tag = 'scoped memory for tpu_custom_call.1']
    #allocation4 [shape = 's32[1]{0}', space=sflag, size = 0x4, scoped, tag = 'scoped memory for tpu_custom_call.1']
    #allocation5 [shape = 'u8[4096]{0}', space=vmem, size = 0x1000, scoped, tag = 'output window, operand 0, single buffered']
    %7 = vsyncpa [#allocation3], 0
    %8 = vsyncpa [#allocation4], 0
    // Predicated region
    $region2: #{tpu_custom_call.1} parent=1 // pred_check
      _
    $region3: #{tpu_custom_call.1} parent=1 // pred_check_branch
      %10 = sbr.rel (0) target = $region5
    $region4: #{tpu_custom_call.1} parent=1 // pred_region
      _
    $region5: #{tpu_custom_call.1} parent=1 // pred_fallthru
      _
    // Predicated region
    $region6: #{tpu_custom_call.1} parent=1 // pred_check
      _
    $region7: #{tpu_custom_call.1} parent=1 // pred_check_branch
      %12 = sbr.rel (0) target = $region9
    $region8: #{tpu_custom_call.1} parent=1 // pred_region
      %14 = vsyncadd [#allocation3], 0
      %s15 = sshll.u32 %s1, 4
      %s16 = int_to_ptr.hbm [resolvable:$true] %s15
      %s17 = sshll.u32 [#allocation2], 4
      %s18 = int_to_ptr.vmem [resolvable:$true] %s17
      %23 = dma.hbm_to_vmem [thread:$0]  %s16, 4096, %s18, [#allocation3], 128, 128, 8
    $region9: #{tpu_custom_call.1} parent=1 // pred_fallthru
      _
    // Predicated region
    $region10: #{tpu_custom_call.1} parent=1 // pred_check
      _
    $region11: #{tpu_custom_call.1} parent=1 // pred_check_branch
      %25 = sbr.rel (0) target = $region13
    $region12: #{tpu_custom_call.1} parent=1 // pred_region
      %27 = dma.done [#allocation3], 4096
    $region13: #{tpu_custom_call.1} parent=1 // pred_fallthru
      _
    %v28 = vld [vmem:[%s0] sm:$0xff]
    %v29 = vmul.f32 %v28, 8.0
    %v30 = vadd.f32 %v29, 7.5
    %v31 = vfloor.f32 %v30
    %v32 = vsub.f32 %v30, %v31
    %v33 = vcvt.f32.s32.to.zero.pseudo %v31
    %v34 = vadd.s32 %v33, 1
    %vm35 = vcmp.ge.s32.totalorder %v33, 0
    %vm36 = vcmp.lt.s32.totalorder %v33, 16
    %vm37 = vmand %vm35, %vm36
    %v38 = vsub.f32 1.0, %v32
    %v39 = vsel %vm37, %v38, 0.0
    %vm40 = vcmp.ge.s32.totalorder %v34, 0
    %vm41 = vcmp.lt.s32.totalorder %v34, 16
    %vm42 = vmand %vm40, %vm41
    %v43 = vsel %vm42, %v32, 0.0
    %v44 = vmul.u32 %v33, 16
    %45 = vrot.lane.b32.xlu0 %v33, 1
    %v46 = vpop.permute.xlu0 %45
    %v47 = vadd.s32 %v44, %v46
    %vm48 = vcmp.lt.s32.totalorder %v47, 0
    %v49 = vadd.s32 %v47, 256
    %v50 = vsel %vm48, %v49, %v47
    %v51 = vlaneseq
    %v52 = vand.u32 %v51, 127
    %v53 = vadd.s32 %v52, 128
    %54 = vset.pattern.permute.xlu0 1
    %55 = vperm.xlu0 %54, %v50
    %v56 = vpop.permute.xlu0 %55
    %vm57 = vcmp.eq.s32.totalorder %v52, %v56
    %vm58 = vcmp.eq.s32.totalorder %v53, %v56
    %v59 = vsel %vm57, 1, 0
    %v60 = vsel %vm58, 1, 0
    %v61 = vcvt.s32.f32 %v59
    %v62 = vcvt.s32.f32 %v60
    %64 = vset.pattern.permute.xlu0 0
    %65 = vperm.xlu0 %64, %v39
    %v66 = vpop.permute.xlu0 %65
    %v68 = vmul.f32 %v66, %v61
    %v69 = vmul.f32 %v66, %v62
    %70 = vrot.lane.b32.xlu0 %v61, 1
    %v71 = vpop.permute.xlu0 %70
    %72 = vrot.lane.b32.xlu0 %v62, 1
    %v73 = vpop.permute.xlu0 %72
    %vm74 = vcmp.lt.s32.totalorder %v52, 1
    %v75 = vsel %vm74, %v71, %v73
    %v76 = vsel %vm74, %v73, %v71
    %78 = vset.pattern.permute.xlu0 0
    %79 = vperm.xlu0 %78, %v43
    %v80 = vpop.permute.xlu0 %79
    %v82 = vmul.f32 %v80, %v76
    %v83 = vmul.f32 %v80, %v75
    %v84 = vadd.f32 %v68, %v82
    %v85 = vadd.f32 %v69, %v83
    %86 = vset.pattern.permute.xlu0 1
    %87 = vperm.xlu0 %86, %v39
    %v88 = vpop.permute.xlu0 %87
    %v90 = vmul.f32 %v88, %v84
    %v91 = vmul.f32 %v88, %v85
    %92 = vrot.lane.b32.xlu0 %v84, 16
    %v93 = vpop.permute.xlu0 %92
    %94 = vrot.lane.b32.xlu0 %v85, 16
    %v95 = vpop.permute.xlu0 %94
    %vm96 = vcmp.lt.s32.totalorder %v52, 16
    %v97 = vsel %vm96, %v93, %v95
    %v98 = vsel %vm96, %v95, %v93
    %99 = vset.pattern.permute.xlu0 1
    %100 = vperm.xlu0 %99, %v43
    %v101 = vpop.permute.xlu0 %100
    %v103 = vmul.f32 %v101, %v98
    %v104 = vmul.f32 %v101, %v97
    %v105 = vadd.f32 %v90, %v103
    %v106 = vadd.f32 %v91, %v104
    %v107 = vld [vmem:[#allocation2] sm:$0xff]
    %v108 = vld [vmem:[#allocation2 + $0x8] sm:$0xff]
    %v109 = vld [vmem:[#allocation2 + $0x10] sm:$0xff]
    %v110 = vld [vmem:[#allocation2 + $0x18] sm:$0xff]
    %v111 = vld [vmem:[#allocation2 + $0x20] sm:$0xff]
    %v112 = vld [vmem:[#allocation2 + $0x28] sm:$0xff]
    %v113 = vld [vmem:[#allocation2 + $0x30] sm:$0xff]
    %v114 = vld [vmem:[#allocation2 + $0x38] sm:$0xff]
    %v115 = vld [vmem:[#allocation2 + $0x40] sm:$0xff]
    %v116 = vld [vmem:[#allocation2 + $0x48] sm:$0xff]
    %v117 = vld [vmem:[#allocation2 + $0x50] sm:$0xff]
    %v118 = vld [vmem:[#allocation2 + $0x58] sm:$0xff]
    %v119 = vld [vmem:[#allocation2 + $0x60] sm:$0xff]
    %v120 = vld [vmem:[#allocation2 + $0x68] sm:$0xff]
    %v121 = vld [vmem:[#allocation2 + $0x70] sm:$0xff]
    %v122 = vld [vmem:[#allocation2 + $0x78] sm:$0xff]
    %v123 = vld [vmem:[#allocation2 + $0x80] sm:$0xff]
    %v124 = vld [vmem:[#allocation2 + $0x88] sm:$0xff]
    %v125 = vld [vmem:[#allocation2 + $0x90] sm:$0xff]
    %v126 = vld [vmem:[#allocation2 + $0x98] sm:$0xff]
    %v127 = vld [vmem:[#allocation2 + $0xa0] sm:$0xff]
    %v128 = vld [vmem:[#allocation2 + $0xa8] sm:$0xff]
    %v129 = vld [vmem:[#allocation2 + $0xb0] sm:$0xff]
    %v130 = vld [vmem:[#allocation2 + $0xb8] sm:$0xff]
    %v131 = vld [vmem:[#allocation2 + $0xc0] sm:$0xff]
    %v132 = vld [vmem:[#allocation2 + $0xc8] sm:$0xff]
    %v133 = vld [vmem:[#allocation2 + $0xd0] sm:$0xff]
    %v134 = vld [vmem:[#allocation2 + $0xd8] sm:$0xff]
    %v135 = vld [vmem:[#allocation2 + $0xe0] sm:$0xff]
    %v136 = vld [vmem:[#allocation2 + $0xe8] sm:$0xff]
    %v137 = vld [vmem:[#allocation2 + $0xf0] sm:$0xff]
    %v138 = vld [vmem:[#allocation2 + $0xf8] sm:$0xff]
    %139 = vmatpush.msra.mxu0 %v122
    %140 = vmatpush.msra.mxu0 %v121
    %141 = vmatpush.msra.mxu0 %v120
    %142 = vmatpush.msra.mxu0 %v119
    %143 = vmatpush.msra.mxu0 %v118
    %144 = vmatpush.msra.mxu0 %v117
    %145 = vmatpush.msra.mxu0 %v116
    %146 = vmatpush.msra.mxu0 %v115
    %147 = vmatpush.msra.mxu0 %v114
    %148 = vmatpush.msra.mxu0 %v113
    %149 = vmatpush.msra.mxu0 %v112
    %150 = vmatpush.msra.mxu0 %v111
    %151 = vmatpush.msra.mxu0 %v110
    %152 = vmatpush.msra.mxu0 %v109
    %153 = vmatpush.msra.mxu0 %v108
    %154 = vmatpush.msra.mxu0 %v107
    %155 = vmatmul.f32.gmra.mxu0 %v105
    %v156 = vpop.f32.mrf.mxu0
    %v157 = vadd.f32 0.0, %v156
    %158 = vdwg.mxu0
    %159 = vmatpush.msra.mxu0 %v138
    %160 = vmatpush.msra.mxu0 %v137
    %161 = vmatpush.msra.mxu0 %v136
    %162 = vmatpush.msra.mxu0 %v135
    %163 = vmatpush.msra.mxu0 %v134
    %164 = vmatpush.msra.mxu0 %v133
    %165 = vmatpush.msra.mxu0 %v132
    %166 = vmatpush.msra.mxu0 %v131
    %167 = vmatpush.msra.mxu0 %v130
    %168 = vmatpush.msra.mxu0 %v129
    %169 = vmatpush.msra.mxu0 %v128
    %170 = vmatpush.msra.mxu0 %v127
    %171 = vmatpush.msra.mxu0 %v126
    %172 = vmatpush.msra.mxu0 %v125
    %173 = vmatpush.msra.mxu0 %v124
    %174 = vmatpush.msra.mxu0 %v123
    %175 = vmatmul.f32.gmra.mxu0 %v106
    %v176 = vpop.f32.mrf.mxu0
    %v177 = vadd.f32 %v157, %v176
    %178 = vdwg.mxu0
    %179 = vst [vmem:[#allocation5] sm:$0xff] %v177
    // Predicated region
    $region14: #{tpu_custom_call.1} parent=1 // pred_check
      _
    $region15: #{tpu_custom_call.1} parent=1 // pred_check_branch
      %181 = sbr.rel (0) target = $region17
    $region16: #{tpu_custom_call.1} parent=1 // pred_region
      %183 = vsyncadd [#allocation4], 0
      %s185 = sshll.u32 [#allocation5], 4
      %s186 = int_to_ptr.vmem [resolvable:$true] %s185
      %s187 = sshll.u32 %s2, 4
      %s188 = int_to_ptr.hbm [resolvable:$true] %s187
      %190 = dma.vmem_to_hbm [thread:$0]  %s186, 128, %s188, [#allocation4]
    $region17: #{tpu_custom_call.1} parent=1 // pred_fallthru
      _
    // Predicated region
    $region18: #{tpu_custom_call.1} parent=1 // pred_check
      _
    $region19: #{tpu_custom_call.1} parent=1 // pred_check_branch
      %192 = sbr.rel (0) target = $region21
    $region20: #{tpu_custom_call.1} parent=1 // pred_region
      %194 = dma.done [#allocation4], 128
    $region21: #{tpu_custom_call.1} parent=1 // pred_fallthru
      _
    %195 = vsyncpa [#allocation3], 1
    %196 = vsyncpa [#allocation4], 1

</llo_original>
